<compile_context>
chip_gen: v6e
topology: v6e:2x2x1
jax: 0.10.0
libtpu: 0.0.40
codegen_flags: <defaults>
</compile_context>

<pallas_src>
import functools

import jax
import jax.numpy as jnp
from jax.experimental import pallas as pl
from jax.experimental.pallas import tpu as pltpu


def _round_up(n, m):
    return ((n + m - 1) // m) * m


def _mlp_kernel(x_ref, w1_ref, b1_ref, w2_ref, b2_ref, o_ref, acc_ref, *,
                c_in, c_out, pack):
    """One (tm, th) tile of: out = relu(x @ W1 + b1) @ W2 + b2.

    x_ref:  (tm//pack, pack*c_in)   -- `pack` consecutive rows per VMEM row
    w1_ref: (c_in, th)      b1_ref: (1, th)
    w2_ref: (th, c_out)     b2_ref: (1, pack*c_out)  (b2 tiled `pack` times)
    o_ref:  (tm//pack, pack*c_out)
    acc_ref:(tm//pack, pack*c_out) f32 accumulator across the H grid axis
    """
    k = pl.program_id(1)

    @pl.when(k == 0)
    def _init():
        acc_ref[...] = jnp.zeros_like(acc_ref)

    w1 = w1_ref[...]
    b1 = b1_ref[...]
    w2 = w2_ref[...]

    # Static (unrolled) loop over the packed sub-columns; pack == 1 degenerates
    # to a single full-width pass.  All slices are static -> no relayout reshapes.
    for j in range(pack):
        xj = x_ref[:, j * c_in:(j + 1) * c_in]                      # (rows, c_in)
        hj = jnp.dot(xj, w1, preferred_element_type=jnp.float32)    # fc1 on MXU
        hj = jnp.maximum(hj + b1, 0.0)                              # bias + ReLU (f32)
        # (dropout p=0.0 -> identity)
        acc_ref[:, j * c_out:(j + 1) * c_out] += jnp.dot(           # fc2 partial sum
            hj, w2, preferred_element_type=jnp.float32)

    @pl.when(k == pl.num_programs(1) - 1)
    def _finalize():
        o_ref[...] = (acc_ref[...] + b2_ref[...]).astype(o_ref.dtype)
        # (dropout p=0.0 -> identity)


def _choose_pack(c_in, c_out, max_pack=16):
    """Smallest row-packing factor making both packed widths lane-dense (128-mult)."""
    for p in range(1, max_pack + 1):
        if (p * c_in) % 128 == 0 and (p * c_out) % 128 == 0:
            return p
    return 1


def _choose_hidden_tile(h):
    """Hidden tile must be == H or a 128-multiple dividing H (BlockSpec rule)."""
    if h > 512:
        for cand in (512, 256, 128):
            if h % cand == 0:
                return cand
    return h


_VMEM_BUDGET = 24 * 1024 * 1024  # conservative: fits v5e/v6e (128 MiB) and v7x (64 MiB)


def _choose_tm(m, c_in, c_out, pack, th, n_wbuf):
    itemsize = 4
    w_bytes = itemsize * n_wbuf * (
        _round_up(c_in, 8) * _round_up(th, 128)
        + _round_up(th, 8) * _round_up(c_out, 128)
        + 8 * _round_up(th, 128))
    avail = max(_VMEM_BUDGET - w_bytes, 2 * 1024 * 1024)
    lane_in = _round_up(pack * c_in, 128) // pack
    lane_out = _round_up(pack * c_out, 128) // pack
    # per original row: 2x x buf + 2x out buf + acc + fc1/ReLU intermediate (f32)
    per_row = itemsize * (2 * lane_in + 3 * lane_out + 2 * ((th + pack - 1) // pack))
    q = 8 * pack                      # keep rows-per-tile a sublane multiple
    tm = max(q, (min(avail // per_row, 1024) // q) * q)
    return min(tm, _round_up(m, q))   # small problems collapse to one grid step


_HAS_BUFFERED = hasattr(pl, "Buffered")


def _spec(shape, index_map, *, single_buffer=False):
    """BlockSpec; grid-invariant operands get a single pipeline buffer."""
    if single_buffer and _HAS_BUFFERED:
        try:
            return pl.BlockSpec(shape, index_map, pipeline_mode=pl.Buffered(1))
        except TypeError:  # older jax without pipeline_mode: fall back to default
            pass
    return pl.BlockSpec(shape, index_map)


@functools.partial(jax.jit, static_argnames=("tm", "th"))
def mlp_pallas(x, w1, b1, w2, b2, *, tm=None, th=None):
    """x: [..., C_in]; w1: [C_in, H]; b1: [H]; w2: [H, C_out]; b2: [C_out]."""
    orig_shape = x.shape
    c_in = orig_shape[-1]
    h = w1.shape[1]
    c_out = w2.shape[1]

    x2d = x.reshape(-1, c_in)
    m = x2d.shape[0]

    pack = _choose_pack(c_in, c_out)
    if th is None:
        th = _choose_hidden_tile(h)
    assert h % th == 0 and (th == h or th % 128 == 0), "bad hidden tile"
    h_tiles = h // th
    weights_invariant = h_tiles == 1
    n_wbuf = 1 if weights_invariant else 2
    if tm is None:
        tm = _choose_tm(m, c_in, c_out, pack, th, n_wbuf)
    assert tm % (8 * pack) == 0, "row tile must be a multiple of 8*pack"

    # Pad rows so any performance-chosen tile size works (cdiv grid).
    m_pad = _round_up(m, tm)
    if m_pad != m:
        x2d = jnp.pad(x2d, ((0, m_pad - m), (0, 0)))

    # Lane-dense packing: `pack` consecutive rows -> one wide (128-mult) row.
    xp = x2d.reshape(m_pad // pack, pack * c_in)
    b1_2d = b1.reshape(1, h)
    b2_packed = jnp.tile(b2.reshape(1, c_out), (1, pack))

    rows = tm // pack  # packed rows per tile

    itemsize = 4
    vmem_est = itemsize * (
        2 * rows * _round_up(pack * c_in, 128)            # x (double-buffered)
        + 2 * rows * _round_up(pack * c_out, 128)         # out (double-buffered)
        + n_wbuf * (_round_up(c_in, 8) * _round_up(th, 128)
                    + _round_up(th, 8) * _round_up(c_out, 128)
                    + 8 * _round_up(th, 128))             # W1/W2/b1
        + 8 * _round_up(pack * c_out, 128)                # b2
        + rows * _round_up(pack * c_out, 128)             # f32 accumulator scratch
        + rows * _round_up(th, 128))                      # fc1/ReLU intermediate
    vmem_limit = int(min(64 * 1024 * 1024, max(2 * vmem_est, 16 * 1024 * 1024)))

    kernel = functools.partial(_mlp_kernel, c_in=c_in, c_out=c_out, pack=pack)

    out_packed = pl.pallas_call(
        kernel,
        out_shape=jax.ShapeDtypeStruct((m_pad // pack, pack * c_out), x.dtype),
        grid_spec=pltpu.PrefetchScalarGridSpec(
            num_scalar_prefetch=0,
            grid=(m_pad // tm, h_tiles),
            in_specs=[
                _spec((rows, pack * c_in), lambda i, k: (i, 0)),                       # x rows
                _spec((c_in, th), lambda i, k: (0, k), single_buffer=weights_invariant),  # W1
                _spec((1, th), lambda i, k: (0, k), single_buffer=weights_invariant),     # b1
                _spec((th, c_out), lambda i, k: (k, 0), single_buffer=weights_invariant), # W2
                _spec((1, pack * c_out), lambda i, k: (0, 0), single_buffer=True),        # b2
            ],
            out_specs=pl.BlockSpec((rows, pack * c_out), lambda i, k: (i, 0)),
            scratch_shapes=[pltpu.VMEM((rows, pack * c_out), jnp.float32)],
        ),
        compiler_params=pltpu.CompilerParams(
            dimension_semantics=("parallel", "arbitrary"),
            vmem_limit_bytes=vmem_limit,
        ),
    )(xp, w1, b1_2d, w2, b2_packed)

    out2d = out_packed.reshape(m_pad, c_out)[:m]
    return out2d.reshape(*orig_shape[:-1], c_out)


def init_mlp_params(key, in_features, hidden_features, out_features, dtype=jnp.float32):
    """Deterministic init mimicking nn.Linear (uniform +-1/sqrt(fan_in))."""
    k1, k2, k3, k4 = jax.random.split(key, 4)
    bound1 = 1.0 / jnp.sqrt(jnp.array(in_features, dtype))
    bound2 = 1.0 / jnp.sqrt(jnp.array(hidden_features, dtype))
    # stored transposed vs PyTorch: [C_in, H] and [H, C_out]
    w1 = jax.random.uniform(k1, (in_features, hidden_features), dtype, -bound1, bound1)
    b1 = jax.random.uniform(k2, (hidden_features,), dtype, -bound1, bound1)
    w2 = jax.random.uniform(k3, (hidden_features, out_features), dtype, -bound2, bound2)
    b2 = jax.random.uniform(k4, (out_features,), dtype, -bound2, bound2)
    return w1, b1, w2, b2


if __name__ == "__main__":
    # Small shapes consistent with MLP usage on point features: x [B, N, C_in]
    B, N = 2, 64
    in_features, hidden_features, out_features = 32, 64, 32

    key = jax.random.PRNGKey(0)
    kx, kp = jax.random.split(key)
    x = jax.random.normal(kx, (B, N, in_features), jnp.float32)
    w1, b1, w2, b2 = init_mlp_params(kp, in_features, hidden_features, out_features)

    out = mlp_pallas(x, w1, b1, w2, b2)
    jax.block_until_ready(out)

    ref = jnp.maximum(x @ w1 + b1, 0.0) @ w2 + b2
    assert out.shape == (B, N, out_features)
    assert jnp.allclose(out, ref, atol=1e-5, rtol=1e-5)

    # Second check: ragged M (padding path) + streamed hidden dim (H grid axis).
    hid2 = 256
    w1b, b1b, w2b, b2b = init_mlp_params(kp, in_features, hid2, out_features)
    x2 = jax.random.normal(jax.random.PRNGKey(1), (1, 100, in_features), jnp.float32)
    out2 = mlp_pallas(x2, w1b, b1b, w2b, b2b, th=128)   # 2 hidden tiles
    jax.block_until_ready(out2)
    ref2 = jnp.maximum(x2 @ w1b + b1b, 0.0) @ w2b + b2b
    assert jnp.allclose(out2, ref2, atol=1e-5, rtol=1e-5)

    print("KERNEL_OK")
</pallas_src>

<mosaic_0001>
module attributes {stable_mosaic.version = 11 : i64} {
  func.func @_mlp_kernel(%arg0: i32, %arg1: i32, %arg2: memref<32x128xf32, #tpu.memory_space<vmem>>, %arg3: memref<32x64xf32, #tpu.memory_space<vmem>>, %arg4: memref<1x64xf32, #tpu.memory_space<vmem>>, %arg5: memref<64x32xf32, #tpu.memory_space<vmem>>, %arg6: memref<1x128xf32, #tpu.memory_space<vmem>>, %arg7: memref<32x128xf32, #tpu.memory_space<vmem>>, %arg8: memref<32x128xf32, #tpu.memory_space<vmem>>) attributes {dimension_semantics = [#tpu.dimension_semantics<parallel>, #tpu.dimension_semantics<arbitrary>], iteration_bounds = array<i64: 1, 1>, scalar_prefetch = 0 : i64, scratch_operands = 1 : i64, tpu.core_type = #tpu.core_type<tc>, window_params = [{transform_indices = @transform_0, window_bounds = array<i64: 32, 128>}, {pipeline_mode = #tpu.pipeline_mode<synchronous>, transform_indices = @transform_1, window_bounds = array<i64: 32, 64>}, {pipeline_mode = #tpu.pipeline_mode<synchronous>, transform_indices = @transform_2, window_bounds = array<i64: 1, 64>}, {pipeline_mode = #tpu.pipeline_mode<synchronous>, transform_indices = @transform_3, window_bounds = array<i64: 64, 32>}, {pipeline_mode = #tpu.pipeline_mode<synchronous>, transform_indices = @transform_4, window_bounds = array<i64: 1, 128>}, {transform_indices = @transform_5, window_bounds = array<i64: 32, 128>}]} {
    %c0_i32 = arith.constant 0 : i32
    %0 = arith.cmpi eq, %arg1, %c0_i32 : i32
    %1 = arith.extui %0 : i1 to i32
    %c0_i32_0 = arith.constant 0 : i32
    %2 = arith.cmpi ne, %1, %c0_i32_0 : i32
    scf.if %2 {
      %cst_40 = arith.constant 0.000000e+00 : f32
      %49 = vector.broadcast %cst_40 : f32 to vector<32x128xf32>
      %c0_41 = arith.constant 0 : index
      %c0_42 = arith.constant 0 : index
      %50 = vector.load %arg8[%c0_41, %c0_42] : memref<32x128xf32, #tpu.memory_space<vmem>>, vector<32x128xf32>
      tpu.vector_store %arg8[%c0_41, %c0_42], %49 {strides = array<i32>} : memref<32x128xf32, #tpu.memory_space<vmem>>, vector<32x128xf32>,
    } else {
    }
    %c0 = arith.constant 0 : index
    %c0_1 = arith.constant 0 : index
    %3 = vector.load %arg3[%c0, %c0_1] : memref<32x64xf32, #tpu.memory_space<vmem>>, vector<32x64xf32>
    %c0_2 = arith.constant 0 : index
    %c0_3 = arith.constant 0 : index
    %4 = vector.load %arg4[%c0_2, %c0_3] : memref<1x64xf32, #tpu.memory_space<vmem>>, vector<1x64xf32>
    %c0_4 = arith.constant 0 : index
    %c0_5 = arith.constant 0 : index
    %5 = vector.load %arg5[%c0_4, %c0_5] : memref<64x32xf32, #tpu.memory_space<vmem>>, vector<64x32xf32>
    %c0_6 = arith.constant 0 : index
    %c0_7 = arith.constant 0 : index
    %6 = vector.load %arg2[%c0_6, %c0_7] : memref<32x128xf32, #tpu.memory_space<vmem>>, vector<32x32xf32>
    %cst = arith.constant dense<0.000000e+00> : vector<32x64xf32>
    %7 = tpu.matmul %6, %3, %cst {dimension_numbers = #tpu.dot_dimension_numbers<[1], [0], [0], [1], [0, 0, 1, 1], [], []>} : vector<32x32xf32>, vector<32x64xf32>, vector<32x64xf32> -> vector<32x64xf32>
    %8 = vector.broadcast %4 : vector<1x64xf32> to vector<32x64xf32>
    %9 = arith.addf %7, %8 : vector<32x64xf32>
    %cst_8 = arith.constant 0.000000e+00 : f32
    %10 = vector.broadcast %cst_8 : f32 to vector<32x64xf32>
    %11 = arith.maximumf %9, %10 : vector<32x64xf32>
    %c0_9 = arith.constant 0 : index
    %c0_10 = arith.constant 0 : index
    %12 = vector.load %arg8[%c0_9, %c0_10] : memref<32x128xf32, #tpu.memory_space<vmem>>, vector<32x32xf32>
    %cst_11 = arith.constant dense<0.000000e+00> : vector<32x32xf32>
    %13 = tpu.matmul %11, %5, %cst_11 {dimension_numbers = #tpu.dot_dimension_numbers<[1], [0], [0], [1], [0, 0, 1, 1], [], []>} : vector<32x64xf32>, vector<64x32xf32>, vector<32x32xf32> -> vector<32x32xf32>
    %14 = arith.addf %12, %13 : vector<32x32xf32>
    %c0_12 = arith.constant 0 : index
    %c0_13 = arith.constant 0 : index
    %15 = vector.load %arg8[%c0_12, %c0_13] : memref<32x128xf32, #tpu.memory_space<vmem>>, vector<32x32xf32>
    tpu.vector_store %arg8[%c0_12, %c0_13], %14 {strides = array<i32>} : memref<32x128xf32, #tpu.memory_space<vmem>>, vector<32x32xf32>,
    %c0_14 = arith.constant 0 : index
    %c32 = arith.constant 32 : index
    %16 = vector.load %arg2[%c0_14, %c32] : memref<32x128xf32, #tpu.memory_space<vmem>>, vector<32x32xf32>
    %cst_15 = arith.constant dense<0.000000e+00> : vector<32x64xf32>
    %17 = tpu.matmul %16, %3, %cst_15 {dimension_numbers = #tpu.dot_dimension_numbers<[1], [0], [0], [1], [0, 0, 1, 1], [], []>} : vector<32x32xf32>, vector<32x64xf32>, vector<32x64xf32> -> vector<32x64xf32>
    %18 = vector.broadcast %4 : vector<1x64xf32> to vector<32x64xf32>
    %19 = arith.addf %17, %18 : vector<32x64xf32>
    %cst_16 = arith.constant 0.000000e+00 : f32
    %20 = vector.broadcast %cst_16 : f32 to vector<32x64xf32>
    %21 = arith.maximumf %19, %20 : vector<32x64xf32>
    %c0_17 = arith.constant 0 : index
    %c32_18 = arith.constant 32 : index
    %22 = vector.load %arg8[%c0_17, %c32_18] : memref<32x128xf32, #tpu.memory_space<vmem>>, vector<32x32xf32>
    %cst_19 = arith.constant dense<0.000000e+00> : vector<32x32xf32>
    %23 = tpu.matmul %21, %5, %cst_19 {dimension_numbers = #tpu.dot_dimension_numbers<[1], [0], [0], [1], [0, 0, 1, 1], [], []>} : vector<32x64xf32>, vector<64x32xf32>, vector<32x32xf32> -> vector<32x32xf32>
    %24 = arith.addf %22, %23 : vector<32x32xf32>
    %c0_20 = arith.constant 0 : index
    %c32_21 = arith.constant 32 : index
    %25 = vector.load %arg8[%c0_20, %c32_21] : memref<32x128xf32, #tpu.memory_space<vmem>>, vector<32x32xf32>
    tpu.vector_store %arg8[%c0_20, %c32_21], %24 {strides = array<i32>} : memref<32x128xf32, #tpu.memory_space<vmem>>, vector<32x32xf32>,
    %c0_22 = arith.constant 0 : index
    %c64 = arith.constant 64 : index
    %26 = vector.load %arg2[%c0_22, %c64] : memref<32x128xf32, #tpu.memory_space<vmem>>, vector<32x32xf32>
    %cst_23 = arith.constant dense<0.000000e+00> : vector<32x64xf32>
    %27 = tpu.matmul %26, %3, %cst_23 {dimension_numbers = #tpu.dot_dimension_numbers<[1], [0], [0], [1], [0, 0, 1, 1], [], []>} : vector<32x32xf32>, vector<32x64xf32>, vector<32x64xf32> -> vector<32x64xf32>
    %28 = vector.broadcast %4 : vector<1x64xf32> to vector<32x64xf32>
    %29 = arith.addf %27, %28 : vector<32x64xf32>
    %cst_24 = arith.constant 0.000000e+00 : f32
    %30 = vector.broadcast %cst_24 : f32 to vector<32x64xf32>
    %31 = arith.maximumf %29, %30 : vector<32x64xf32>
    %c0_25 = arith.constant 0 : index
    %c64_26 = arith.constant 64 : index
    %32 = vector.load %arg8[%c0_25, %c64_26] : memref<32x128xf32, #tpu.memory_space<vmem>>, vector<32x32xf32>
    %cst_27 = arith.constant dense<0.000000e+00> : vector<32x32xf32>
    %33 = tpu.matmul %31, %5, %cst_27 {dimension_numbers = #tpu.dot_dimension_numbers<[1], [0], [0], [1], [0, 0, 1, 1], [], []>} : vector<32x64xf32>, vector<64x32xf32>, vector<32x32xf32> -> vector<32x32xf32>
    %34 = arith.addf %32, %33 : vector<32x32xf32>
    %c0_28 = arith.constant 0 : index
    %c64_29 = arith.constant 64 : index
    %35 = vector.load %arg8[%c0_28, %c64_29] : memref<32x128xf32, #tpu.memory_space<vmem>>, vector<32x32xf32>
    tpu.vector_store %arg8[%c0_28, %c64_29], %34 {strides = array<i32>} : memref<32x128xf32, #tpu.memory_space<vmem>>, vector<32x32xf32>,
    %c0_30 = arith.constant 0 : index
    %c96 = arith.constant 96 : index
    %36 = vector.load %arg2[%c0_30, %c96] : memref<32x128xf32, #tpu.memory_space<vmem>>, vector<32x32xf32>
    %cst_31 = arith.constant dense<0.000000e+00> : vector<32x64xf32>
    %37 = tpu.matmul %36, %3, %cst_31 {dimension_numbers = #tpu.dot_dimension_numbers<[1], [0], [0], [1], [0, 0, 1, 1], [], []>} : vector<32x32xf32>, vector<32x64xf32>, vector<32x64xf32> -> vector<32x64xf32>
    %38 = vector.broadcast %4 : vector<1x64xf32> to vector<32x64xf32>
    %39 = arith.addf %37, %38 : vector<32x64xf32>
    %cst_32 = arith.constant 0.000000e+00 : f32
    %40 = vector.broadcast %cst_32 : f32 to vector<32x64xf32>
    %41 = arith.maximumf %39, %40 : vector<32x64xf32>
    %c0_33 = arith.constant 0 : index
    %c96_34 = arith.constant 96 : index
    %42 = vector.load %arg8[%c0_33, %c96_34] : memref<32x128xf32, #tpu.memory_space<vmem>>, vector<32x32xf32>
    %cst_35 = arith.constant dense<0.000000e+00> : vector<32x32xf32>
    %43 = tpu.matmul %41, %5, %cst_35 {dimension_numbers = #tpu.dot_dimension_numbers<[1], [0], [0], [1], [0, 0, 1, 1], [], []>} : vector<32x64xf32>, vector<64x32xf32>, vector<32x32xf32> -> vector<32x32xf32>
    %44 = arith.addf %42, %43 : vector<32x32xf32>
    %c0_36 = arith.constant 0 : index
    %c96_37 = arith.constant 96 : index
    %45 = vector.load %arg8[%c0_36, %c96_37] : memref<32x128xf32, #tpu.memory_space<vmem>>, vector<32x32xf32>
    tpu.vector_store %arg8[%c0_36, %c96_37], %44 {strides = array<i32>} : memref<32x128xf32, #tpu.memory_space<vmem>>, vector<32x32xf32>,
    %c0_i32_38 = arith.constant 0 : i32
    %46 = arith.cmpi eq, %arg1, %c0_i32_38 : i32
    %47 = arith.extui %46 : i1 to i32
    %c0_i32_39 = arith.constant 0 : i32
    %48 = arith.cmpi ne, %47, %c0_i32_39 : i32
    scf.if %48 {
      %c0_40 = arith.constant 0 : index
      %c0_41 = arith.constant 0 : index
      %49 = vector.load %arg8[%c0_40, %c0_41] : memref<32x128xf32, #tpu.memory_space<vmem>>, vector<32x128xf32>
      %c0_42 = arith.constant 0 : index
      %c0_43 = arith.constant 0 : index
      %50 = vector.load %arg6[%c0_42, %c0_43] : memref<1x128xf32, #tpu.memory_space<vmem>>, vector<1x128xf32>
      %51 = vector.broadcast %50 : vector<1x128xf32> to vector<32x128xf32>
      %52 = arith.addf %49, %51 : vector<32x128xf32>
      %c0_44 = arith.constant 0 : index
      %c0_45 = arith.constant 0 : index
      %53 = vector.load %arg7[%c0_44, %c0_45] : memref<32x128xf32, #tpu.memory_space<vmem>>, vector<32x128xf32>
      tpu.vector_store %arg7[%c0_44, %c0_45], %52 {strides = array<i32>} : memref<32x128xf32, #tpu.memory_space<vmem>>, vector<32x128xf32>,
    } else {
    }
    return
  }
  func.func @transform_0(%arg0: i32, %arg1: i32) -> (i32, i32) {
    %c0_i32 = arith.constant 0 : i32
    %c0_i32_0 = arith.constant 0 : i32
    return %arg0, %c0_i32 : i32, i32
  }
  func.func @transform_1(%arg0: i32, %arg1: i32) -> (i32, i32) {
    %c0_i32 = arith.constant 0 : i32
    %c0_i32_0 = arith.constant 0 : i32
    return %c0_i32, %arg1 : i32, i32
  }
  func.func @transform_2(%arg0: i32, %arg1: i32) -> (i32, i32) {
    %c0_i32 = arith.constant 0 : i32
    %c0_i32_0 = arith.constant 0 : i32
    return %c0_i32, %arg1 : i32, i32
  }
  func.func @transform_3(%arg0: i32, %arg1: i32) -> (i32, i32) {
    %c0_i32 = arith.constant 0 : i32
    %c0_i32_0 = arith.constant 0 : i32
    return %arg1, %c0_i32 : i32, i32
  }
  func.func @transform_4(%arg0: i32, %arg1: i32) -> (i32, i32) {
    %c0_i32 = arith.constant 0 : i32
    %c0_i32_0 = arith.constant 0 : i32
    %c0_i32_1 = arith.constant 0 : i32
    return %c0_i32, %c0_i32_0 : i32, i32
  }
  func.func @transform_5(%arg0: i32, %arg1: i32) -> (i32, i32) {
    %c0_i32 = arith.constant 0 : i32
    %c0_i32_0 = arith.constant 0 : i32
    return %arg0, %c0_i32 : i32, i32
  }
}

</mosaic_0001>

<llo_original>
// kernel: mlp_pallas.1
$region0: #{mlp_pallas.1}
  #allocation0 [shape = 'u32[]', space=smem, size = 0x4, offset = 0x4, fixed_abs, tag = 'smem constant byte address 0x4 - core index']
  #allocation1 [shape = 'u32[144,128]{1,0:T(1,128)}', space=vmem, size = 0x12000, scoped, tag = 'internal scratch']
  #allocation2 [shape = 'f32[32,128]{1,0:T(8,128)}', space=vmem, size = 0x4000, scoped, tag = 'scratch operand']
  %s0 = inlined_call_operand.vmem [shape: f32[32,128], index: 0, kind: input, shape index: {}]
  %s1 = inlined_call_operand.vmem [shape: f32[32,64], index: 1, kind: input, shape index: {}]
  %s2 = inlined_call_operand.vmem [shape: f32[1,64], index: 2, kind: input, shape index: {}]
  %s3 = inlined_call_operand.vmem [shape: f32[64,32], index: 3, kind: input, shape index: {}]
  %s4 = inlined_call_operand.vmem [shape: f32[1,128], index: 4, kind: input, shape index: {}]
  %s5 = inlined_call_operand.vmem [shape: f32[32,128], index: 5, kind: output, shape index: {}]
  %s6 = sld [smem:[#allocation0]]
  $region38: #{mlp_pallas.1} parent=0
    _
  %s8 = ssub.s32 1, %s6
  %s9 = scalar_select 0, %s8, %s6
  // Predicated region
  $region2: #{mlp_pallas.1} parent=0 // pred_check
    _
  $region3: #{mlp_pallas.1} parent=0 // pred_check_branch
    %11 = sbr.rel (0) target = $region5
  $region4: #{mlp_pallas.1} parent=0 // pred_region
    _
  $region5: #{mlp_pallas.1} parent=0 // pred_fallthru
    _
  // Predicated region
  $region6: #{mlp_pallas.1} parent=0 // pred_check
    _
  $region7: #{mlp_pallas.1} parent=0 // pred_check_branch
    %13 = sbr.rel (0) target = $region9
  $region8: #{mlp_pallas.1} parent=0 // pred_region
    _
  $region9: #{mlp_pallas.1} parent=0 // pred_fallthru
    _
  // Predicated region
  $region10: #{mlp_pallas.1} parent=0 // pred_check
    _
  $region11: #{mlp_pallas.1} parent=0 // pred_check_branch
    %15 = sbr.rel (0) target = $region13
  $region12: #{mlp_pallas.1} parent=0 // pred_region
    _
  $region13: #{mlp_pallas.1} parent=0 // pred_fallthru
    _
  // Predicated region
  $region14: #{mlp_pallas.1} parent=0 // pred_check
    _
  $region15: #{mlp_pallas.1} parent=0 // pred_check_branch
    %17 = sbr.rel (0) target = $region17
  $region16: #{mlp_pallas.1} parent=0 // pred_region
    _
  $region17: #{mlp_pallas.1} parent=0 // pred_fallthru
    _
  // Predicated region
  $region18: #{mlp_pallas.1} parent=0 // pred_check
    _
  $region19: #{mlp_pallas.1} parent=0 // pred_check_branch
    %19 = sbr.rel (0) target = $region21
  $region20: #{mlp_pallas.1} parent=0 // pred_region
    _
  $region21: #{mlp_pallas.1} parent=0 // pred_fallthru
    _
  %p20 = scmp.eq.s32.totalorder 0, 0
  // Predicated region
  $region22: #{mlp_pallas.1} parent=0 // pred_check
    %p21 = pneg %p20
  $region23: #{mlp_pallas.1} parent=0 // pred_check_branch
    %23 = sbr.rel (%p21) target = $region25
  $region24: #{mlp_pallas.1} parent=0 // pred_region
    %24 = vst [vmem:[#allocation2] sm:$0xff] 0.0
    %25 = vst [vmem:[#allocation2 + $0x8] sm:$0xff] 0.0
    %26 = vst [vmem:[#allocation2 + $0x10] sm:$0xff] 0.0
    %27 = vst [vmem:[#allocation2 + $0x18] sm:$0xff] 0.0
  $region25: #{mlp_pallas.1} parent=0 // pred_fallthru
    _
  %v28 = vld [vmem:[%s1] sm:$0xff]
  %v29 = vld [vmem:[%s1 + $0x8] sm:$0xff]
  %v30 = vld [vmem:[%s1 + $0x10] sm:$0xff]
  %v31 = vld [vmem:[%s1 + $0x18] sm:$0xff]
  %v32 = vld [vmem:[%s2] sm:$0x1]
  %v33 = vld [vmem:[%s3] sm:$0xff]
  %v34 = vld [vmem:[%s3 + $0x8] sm:$0xff]
  %v35 = vld [vmem:[%s3 + $0x10] sm:$0xff]
  %v36 = vld [vmem:[%s3 + $0x18] sm:$0xff]
  %v37 = vld [vmem:[%s3 + $0x20] sm:$0xff]
  %v38 = vld [vmem:[%s3 + $0x28] sm:$0xff]
  %v39 = vld [vmem:[%s3 + $0x30] sm:$0xff]
  %v40 = vld [vmem:[%s3 + $0x38] sm:$0xff]
  %v41 = vld [vmem:[%s0] sm:$0xff]
  %v42 = vld [vmem:[%s0 + $0x8] sm:$0xff]
  %v43 = vld [vmem:[%s0 + $0x10] sm:$0xff]
  %v44 = vld [vmem:[%s0 + $0x18] sm:$0xff]
  %v46 = vlaneseq
  %v47 = vshrl.u32 %v46, 7
  %v48 = vsub.s32 0, %v47
  %v49 = vrot.slane %v32, %v48
  %vm51 = vcmask 261120
  %v53 = vsel %vm51, %v41, 0
  %v56 = vsel %vm51, %v42, 0
  %v59 = vsel %vm51, %v43, 0
  %v62 = vsel %vm51, %v44, 0
  %64 = vmatprep.subr.mxu0 0.0
  %65 = vmatpush1.msra.mxu0 0.0
  %66 = vmatprep.subr.mxu0 0.0
  %67 = vmatpush1.msra.mxu0 0.0
  %68 = vmatprep.subr.mxu0 0.0
  %69 = vmatpush1.msra.mxu0 0.0
  %70 = vmatprep.subr.mxu0 0.0
  %71 = vmatpush1.msra.mxu0 0.0
  %72 = vmatprep.subr.mxu0 0.0
  %73 = vmatpush1.msra.mxu0 0.0
  %74 = vmatprep.subr.mxu0 0.0
  %75 = vmatpush1.msra.mxu0 0.0
  %76 = vmatprep.subr.mxu0 0.0
  %77 = vmatpush1.msra.mxu0 0.0
  %78 = vmatprep.subr.mxu0 0.0
  %79 = vmatpush1.msra.mxu0 0.0
  %80 = vmatprep.subr.mxu0 0.0
  %81 = vmatpush1.msra.mxu0 0.0
  %82 = vmatprep.subr.mxu0 0.0
  %83 = vmatpush1.msra.mxu0 0.0
  %84 = vmatprep.subr.mxu0 0.0
  %85 = vmatpush1.msra.mxu0 0.0
  %86 = vmatprep.subr.mxu0 0.0
  %87 = vmatpush1.msra.mxu0 0.0
  %88 = vmatprep.subr.mxu0 0.0
  %89 = vmatpush1.msra.mxu0 %v31
  %90 = vmatprep.subr.mxu0 0.0
  %91 = vmatpush1.msra.mxu0 %v30
  %92 = vmatprep.subr.mxu0 0.0
  %93 = vmatpush1.msra.mxu0 %v29
  %94 = vmatprep.subr.mxu0 0.0
  %95 = vmatpush1.msra.mxu0 %v28
  %96 = vmatprep.subr.mxu0 0.0
  %97 = vmatpush2.msra.mxu0 0.0
  %98 = vmatprep.subr.mxu0 0.0
  %99 = vmatpush2.msra.mxu0 0.0
  %100 = vmatprep.subr.mxu0 0.0
  %101 = vmatpush2.msra.mxu0 0.0
  %102 = vmatprep.subr.mxu0 0.0
  %103 = vmatpush2.msra.mxu0 0.0
  %104 = vmatprep.subr.mxu0 0.0
  %105 = vmatpush2.msra.mxu0 0.0
  %106 = vmatprep.subr.mxu0 0.0
  %107 = vmatpush2.msra.mxu0 0.0
  %108 = vmatprep.subr.mxu0 0.0
  %109 = vmatpush2.msra.mxu0 0.0
  %110 = vmatprep.subr.mxu0 0.0
  %111 = vmatpush2.msra.mxu0 0.0
  %112 = vmatprep.subr.mxu0 0.0
  %113 = vmatpush2.msra.mxu0 0.0
  %114 = vmatprep.subr.mxu0 0.0
  %115 = vmatpush2.msra.mxu0 0.0
  %116 = vmatprep.subr.mxu0 0.0
  %117 = vmatpush2.msra.mxu0 0.0
  %118 = vmatprep.subr.mxu0 0.0
  %119 = vmatpush2.msra.mxu0 0.0
  %120 = vmatprep.subr.mxu0 0.0
  %121 = vmatpush2.msra.mxu0 0.0
  %122 = vmatprep.subr.mxu0 0.0
  %123 = vmatpush2.msra.mxu0 0.0
  %124 = vmatprep.subr.mxu0 0.0
  %125 = vmatpush2.msra.mxu0 0.0
  %126 = vmatprep.subr.mxu0 0.0
  %127 = vmatpush2.msra.mxu0 0.0
  %128 = vmatprep.mubr.f32.mxu0 0.0
  %129 = vmatmul.mubr.f32.gmra.mxu0 %v53
  %v130 = vpop.f32.mrf.mxu0
  %v131 = vadd.f32 %v49, %v130
  %v132 = vpop.f32.mrf.mxu0
  %133 = vmatprep.mubr.f32.mxu0 0.0
  %134 = vmatmul.mubr.f32.gmra.mxu0 %v56
  %v135 = vpop.f32.mrf.mxu0
  %v136 = vadd.f32 %v49, %v135
  %v137 = vpop.f32.mrf.mxu0
  %138 = vmatprep.mubr.f32.mxu0 0.0
  %139 = vmatmul.mubr.f32.gmra.mxu0 %v59
  %v140 = vpop.f32.mrf.mxu0
  %v141 = vadd.f32 %v49, %v140
  %v142 = vpop.f32.mrf.mxu0
  %143 = vmatprep.mubr.f32.mxu0 0.0
  %144 = vmatmul.mubr.f32.gmra.mxu0 %v62
  %v145 = vpop.f32.mrf.mxu0
  %v146 = vadd.f32 %v49, %v145
  %v147 = vpop.f32.mrf.mxu0
  %148 = vdwg.mxu0
  %v149 = vmax.f32 %v131, 0.0
  %v150 = vmax.f32 %v136, 0.0
  %v151 = vmax.f32 %v141, 0.0
  %v152 = vmax.f32 %v146, 0.0
  %v153 = vld [vmem:[#allocation2] sm:$0xff]
  %v154 = vld [vmem:[#allocation2 + $0x8] sm:$0xff]
  %v155 = vld [vmem:[#allocation2 + $0x10] sm:$0xff]
  %v156 = vld [vmem:[#allocation2 + $0x18] sm:$0xff]
  %vm157 = vcmask 523264
  %v159 = vsel %vm157, %v149, 0
  %v162 = vsel %vm157, %v150, 0
  %v165 = vsel %vm157, %v151, 0
  %v168 = vsel %vm157, %v152, 0
  %170 = vmatprep.subr.mxu0 0.0
  %171 = vmatpush1.msra.mxu0 0.0
  %172 = vmatprep.subr.mxu0 0.0
  %173 = vmatpush1.msra.mxu0 0.0
  %174 = vmatprep.subr.mxu0 0.0
  %175 = vmatpush1.msra.mxu0 0.0
  %176 = vmatprep.subr.mxu0 0.0
  %177 = vmatpush1.msra.mxu0 0.0
  %178 = vmatprep.subr.mxu0 0.0
  %179 = vmatpush1.msra.mxu0 0.0
  %180 = vmatprep.subr.mxu0 0.0
  %181 = vmatpush1.msra.mxu0 0.0
  %182 = vmatprep.subr.mxu0 0.0
  %183 = vmatpush1.msra.mxu0 0.0
  %184 = vmatprep.subr.mxu0 0.0
  %185 = vmatpush1.msra.mxu0 0.0
  %186 = vmatprep.subr.mxu0 0.0
  %187 = vmatpush1.msra.mxu0 %v40
  %188 = vmatprep.subr.mxu0 0.0
  %189 = vmatpush1.msra.mxu0 %v39
  %190 = vmatprep.subr.mxu0 0.0
  %191 = vmatpush1.msra.mxu0 %v38
  %192 = vmatprep.subr.mxu0 0.0
  %193 = vmatpush1.msra.mxu0 %v37
  %194 = vmatprep.subr.mxu0 0.0
  %195 = vmatpush1.msra.mxu0 %v36
  %196 = vmatprep.subr.mxu0 0.0
  %197 = vmatpush1.msra.mxu0 %v35
  %198 = vmatprep.subr.mxu0 0.0
  %199 = vmatpush1.msra.mxu0 %v34
  %200 = vmatprep.subr.mxu0 0.0
  %201 = vmatpush1.msra.mxu0 %v33
  %202 = vmatprep.subr.mxu0 0.0
  %203 = vmatpush2.msra.mxu0 0.0
  %204 = vmatprep.subr.mxu0 0.0
  %205 = vmatpush2.msra.mxu0 0.0
  %206 = vmatprep.subr.mxu0 0.0
  %207 = vmatpush2.msra.mxu0 0.0
  %208 = vmatprep.subr.mxu0 0.0
  %209 = vmatpush2.msra.mxu0 0.0
  %210 = vmatprep.subr.mxu0 0.0
  %211 = vmatpush2.msra.mxu0 0.0
  %212 = vmatprep.subr.mxu0 0.0
  %213 = vmatpush2.msra.mxu0 0.0
  %214 = vmatprep.subr.mxu0 0.0
  %215 = vmatpush2.msra.mxu0 0.0
  %216 = vmatprep.subr.mxu0 0.0
  %217 = vmatpush2.msra.mxu0 0.0
  %218 = vmatprep.subr.mxu0 0.0
  %219 = vmatpush2.msra.mxu0 0.0
  %220 = vmatprep.subr.mxu0 0.0
  %221 = vmatpush2.msra.mxu0 0.0
  %222 = vmatprep.subr.mxu0 0.0
  %223 = vmatpush2.msra.mxu0 0.0
  %224 = vmatprep.subr.mxu0 0.0
  %225 = vmatpush2.msra.mxu0 0.0
  %226 = vmatprep.subr.mxu0 0.0
  %227 = vmatpush2.msra.mxu0 0.0
  %228 = vmatprep.subr.mxu0 0.0
  %229 = vmatpush2.msra.mxu0 0.0
  %230 = vmatprep.subr.mxu0 0.0
  %231 = vmatpush2.msra.mxu0 0.0
  %232 = vmatprep.subr.mxu0 0.0
  %233 = vmatpush2.msra.mxu0 0.0
  %234 = vmatprep.mubr.f32.mxu0 0.0
  %235 = vmatmul.mubr.f32.gmra.mxu0 %v159
  %v236 = vpop.f32.mrf.mxu0
  %v237 = vadd.f32 0.0, %v236
  %v238 = vpop.f32.mrf.mxu0
  %239 = vmatprep.mubr.f32.mxu0 0.0
  %240 = vmatmul.mubr.f32.gmra.mxu0 %v162
  %v241 = vpop.f32.mrf.mxu0
  %v242 = vadd.f32 0.0, %v241
  %v243 = vpop.f32.mrf.mxu0
  %244 = vmatprep.mubr.f32.mxu0 0.0
  %245 = vmatmul.mubr.f32.gmra.mxu0 %v165
  %v246 = vpop.f32.mrf.mxu0
  %v247 = vadd.f32 0.0, %v246
  %v248 = vpop.f32.mrf.mxu0
  %249 = vmatprep.mubr.f32.mxu0 0.0
  %250 = vmatmul.mubr.f32.gmra.mxu0 %v168
  %v251 = vpop.f32.mrf.mxu0
  %v252 = vadd.f32 0.0, %v251
  %v253 = vpop.f32.mrf.mxu0
  %254 = vdwg.mxu0
  %v255 = vadd.f32 %v153, %v237
  %v256 = vadd.f32 %v154, %v242
  %v257 = vadd.f32 %v155, %v247
  %v258 = vadd.f32 %v156, %v252
  %259 = vst.msk [vmem:[#allocation2] sm:$0xff] %vm51, %v255
  %260 = vst.msk [vmem:[#allocation2 + $0x8] sm:$0xff] %vm51, %v256
  %261 = vst.msk [vmem:[#allocation2 + $0x10] sm:$0xff] %vm51, %v257
  %262 = vst.msk [vmem:[#allocation2 + $0x18] sm:$0xff] %vm51, %v258
  %v263 = vld [vmem:[%s0] sm:$0xff]
  %v264 = vld [vmem:[%s0 + $0x8] sm:$0xff]
  %v265 = vld [vmem:[%s0 + $0x10] sm:$0xff]
  %v266 = vld [vmem:[%s0 + $0x18] sm:$0xff]
  %271 = vrot.lane.b32.xlu0 %v263, 96
  %v272 = vpop.permute.xlu0 %271
  %273 = vrot.lane.b32.xlu0 %v264, 96
  %v274 = vpop.permute.xlu0 %273
  %275 = vrot.lane.b32.xlu0 %v265, 96
  %v276 = vpop.permute.xlu0 %275
  %277 = vrot.lane.b32.xlu0 %v266, 96
  %v278 = vpop.permute.xlu0 %277
  %v279 = vsel %vm51, %v272, 0
  %v281 = vsel %vm51, %v274, 0
  %v283 = vsel %vm51, %v276, 0
  %v285 = vsel %vm51, %v278, 0
  %287 = vmatprep.subr.mxu0 0.0
  %288 = vmatpush1.msra.mxu0 0.0
  %289 = vmatprep.subr.mxu0 0.0
  %290 = vmatpush1.msra.mxu0 0.0
  %291 = vmatprep.subr.mxu0 0.0
  %292 = vmatpush1.msra.mxu0 0.0
  %293 = vmatprep.subr.mxu0 0.0
  %294 = vmatpush1.msra.mxu0 0.0
  %295 = vmatprep.subr.mxu0 0.0
  %296 = vmatpush1.msra.mxu0 0.0
  %297 = vmatprep.subr.mxu0 0.0
  %298 = vmatpush1.msra.mxu0 0.0
  %299 = vmatprep.subr.mxu0 0.0
  %300 = vmatpush1.msra.mxu0 0.0
  %301 = vmatprep.subr.mxu0 0.0
  %302 = vmatpush1.msra.mxu0 0.0
  %303 = vmatprep.subr.mxu0 0.0
  %304 = vmatpush1.msra.mxu0 0.0
  %305 = vmatprep.subr.mxu0 0.0
  %306 = vmatpush1.msra.mxu0 0.0
  %307 = vmatprep.subr.mxu0 0.0
  %308 = vmatpush1.msra.mxu0 0.0
  %309 = vmatprep.subr.mxu0 0.0
  %310 = vmatpush1.msra.mxu0 0.0
  %311 = vmatprep.subr.mxu0 0.0
  %312 = vmatpush1.msra.mxu0 %v31
  %313 = vmatprep.subr.mxu0 0.0
  %314 = vmatpush1.msra.mxu0 %v30
  %315 = vmatprep.subr.mxu0 0.0
  %316 = vmatpush1.msra.mxu0 %v29
  %317 = vmatprep.subr.mxu0 0.0
  %318 = vmatpush1.msra.mxu0 %v28
  %319 = vmatprep.subr.mxu0 0.0
  %320 = vmatpush2.msra.mxu0 0.0
  %321 = vmatprep.subr.mxu0 0.0
  %322 = vmatpush2.msra.mxu0 0.0
  %323 = vmatprep.subr.mxu0 0.0
  %324 = vmatpush2.msra.mxu0 0.0
  %325 = vmatprep.subr.mxu0 0.0
  %326 = vmatpush2.msra.mxu0 0.0
  %327 = vmatprep.subr.mxu0 0.0
  %328 = vmatpush2.msra.mxu0 0.0
  %329 = vmatprep.subr.mxu0 0.0
  %330 = vmatpush2.msra.mxu0 0.0
  %331 = vmatprep.subr.mxu0 0.0
  %332 = vmatpush2.msra.mxu0 0.0
  %333 = vmatprep.subr.mxu0 0.0
  %334 = vmatpush2.msra.mxu0 0.0
  %335 = vmatprep.subr.mxu0 0.0
  %336 = vmatpush2.msra.mxu0 0.0
  %337 = vmatprep.subr.mxu0 0.0
  %338 = vmatpush2.msra.mxu0 0.0
  %339 = vmatprep.subr.mxu0 0.0
  %340 = vmatpush2.msra.mxu0 0.0
  %341 = vmatprep.subr.mxu0 0.0
  %342 = vmatpush2.msra.mxu0 0.0
  %343 = vmatprep.subr.mxu0 0.0
  %344 = vmatpush2.msra.mxu0 0.0
  %345 = vmatprep.subr.mxu0 0.0
  %346 = vmatpush2.msra.mxu0 0.0
  %347 = vmatprep.subr.mxu0 0.0
  %348 = vmatpush2.msra.mxu0 0.0
  %349 = vmatprep.subr.mxu0 0.0
  %350 = vmatpush2.msra.mxu0 0.0
  %351 = vmatprep.mubr.f32.mxu0 0.0
  %352 = vmatmul.mubr.f32.gmra.mxu0 %v279
  %v353 = vpop.f32.mrf.mxu0
  %v354 = vadd.f32 %v49, %v353
  %v355 = vpop.f32.mrf.mxu0
  %356 = vmatprep.mubr.f32.mxu0 0.0
  %357 = vmatmul.mubr.f32.gmra.mxu0 %v281
  %v358 = vpop.f32.mrf.mxu0
  %v359 = vadd.f32 %v49, %v358
  %v360 = vpop.f32.mrf.mxu0
  %361 = vmatprep.mubr.f32.mxu0 0.0
  %362 = vmatmul.mubr.f32.gmra.mxu0 %v283
  %v363 = vpop.f32.mrf.mxu0
  %v364 = vadd.f32 %v49, %v363
  %v365 = vpop.f32.mrf.mxu0
  %366 = vmatprep.mubr.f32.mxu0 0.0
  %367 = vmatmul.mubr.f32.gmra.mxu0 %v285
  %v368 = vpop.f32.mrf.mxu0
  %v369 = vadd.f32 %v49, %v368
  %v370 = vpop.f32.mrf.mxu0
  %371 = vdwg.mxu0
  %v372 = vmax.f32 %v354, 0.0
  %v373 = vmax.f32 %v359, 0.0
  %v374 = vmax.f32 %v364, 0.0
  %v375 = vmax.f32 %v369, 0.0
  %v376 = vld [vmem:[#allocation2] sm:$0xff]
  %v377 = vld [vmem:[#allocation2 + $0x8] sm:$0xff]
  %v378 = vld [vmem:[#allocation2 + $0x10] sm:$0xff]
  %v379 = vld [vmem:[#allocation2 + $0x18] sm:$0xff]
  %v381 = vsel %vm157, %v372, 0
  %v384 = vsel %vm157, %v373, 0
  %v387 = vsel %vm157, %v374, 0
  %v390 = vsel %vm157, %v375, 0
  %392 = vmatprep.subr.mxu0 0.0
  %393 = vmatpush1.msra.mxu0 0.0
  %394 = vmatprep.subr.mxu0 0.0
  %395 = vmatpush1.msra.mxu0 0.0
  %396 = vmatprep.subr.mxu0 0.0
  %397 = vmatpush1.msra.mxu0 0.0
  %398 = vmatprep.subr.mxu0 0.0
  %399 = vmatpush1.msra.mxu0 0.0
  %400 = vmatprep.subr.mxu0 0.0
  %401 = vmatpush1.msra.mxu0 0.0
  %402 = vmatprep.subr.mxu0 0.0
  %403 = vmatpush1.msra.mxu0 0.0
  %404 = vmatprep.subr.mxu0 0.0
  %405 = vmatpush1.msra.mxu0 0.0
  %406 = vmatprep.subr.mxu0 0.0
  %407 = vmatpush1.msra.mxu0 0.0
  %408 = vmatprep.subr.mxu0 0.0
  %409 = vmatpush1.msra.mxu0 %v40
  %410 = vmatprep.subr.mxu0 0.0
  %411 = vmatpush1.msra.mxu0 %v39
  %412 = vmatprep.subr.mxu0 0.0
  %413 = vmatpush1.msra.mxu0 %v38
  %414 = vmatprep.subr.mxu0 0.0
  %415 = vmatpush1.msra.mxu0 %v37
  %416 = vmatprep.subr.mxu0 0.0
  %417 = vmatpush1.msra.mxu0 %v36
  %418 = vmatprep.subr.mxu0 0.0
  %419 = vmatpush1.msra.mxu0 %v35
  %420 = vmatprep.subr.mxu0 0.0
  %421 = vmatpush1.msra.mxu0 %v34
  %422 = vmatprep.subr.mxu0 0.0
  %423 = vmatpush1.msra.mxu0 %v33
  %424 = vmatprep.subr.mxu0 0.0
  %425 = vmatpush2.msra.mxu0 0.0
  %426 = vmatprep.subr.mxu0 0.0
  %427 = vmatpush2.msra.mxu0 0.0
  %428 = vmatprep.subr.mxu0 0.0
  %429 = vmatpush2.msra.mxu0 0.0
  %430 = vmatprep.subr.mxu0 0.0
  %431 = vmatpush2.msra.mxu0 0.0
  %432 = vmatprep.subr.mxu0 0.0
  %433 = vmatpush2.msra.mxu0 0.0
  %434 = vmatprep.subr.mxu0 0.0
  %435 = vmatpush2.msra.mxu0 0.0
  %436 = vmatprep.subr.mxu0 0.0
  %437 = vmatpush2.msra.mxu0 0.0
  %438 = vmatprep.subr.mxu0 0.0
  %439 = vmatpush2.msra.mxu0 0.0
  %440 = vmatprep.subr.mxu0 0.0
  %441 = vmatpush2.msra.mxu0 0.0
  %442 = vmatprep.subr.mxu0 0.0
  %443 = vmatpush2.msra.mxu0 0.0
  %444 = vmatprep.subr.mxu0 0.0
  %445 = vmatpush2.msra.mxu0 0.0
  %446 = vmatprep.subr.mxu0 0.0
  %447 = vmatpush2.msra.mxu0 0.0
  %448 = vmatprep.subr.mxu0 0.0
  %449 = vmatpush2.msra.mxu0 0.0
  %450 = vmatprep.subr.mxu0 0.0
  %451 = vmatpush2.msra.mxu0 0.0
  %452 = vmatprep.subr.mxu0 0.0
  %453 = vmatpush2.msra.mxu0 0.0
  %454 = vmatprep.subr.mxu0 0.0
  %455 = vmatpush2.msra.mxu0 0.0
  %456 = vmatprep.mubr.f32.mxu0 0.0
  %457 = vmatmul.mubr.f32.gmra.mxu0 %v381
  %v458 = vpop.f32.mrf.mxu0
  %v459 = vadd.f32 0.0, %v458
  %v460 = vpop.f32.mrf.mxu0
  %461 = vmatprep.mubr.f32.mxu0 0.0
  %462 = vmatmul.mubr.f32.gmra.mxu0 %v384
  %v463 = vpop.f32.mrf.mxu0
  %v464 = vadd.f32 0.0, %v463
  %v465 = vpop.f32.mrf.mxu0
  %466 = vmatprep.mubr.f32.mxu0 0.0
  %467 = vmatmul.mubr.f32.gmra.mxu0 %v387
  %v468 = vpop.f32.mrf.mxu0
  %v469 = vadd.f32 0.0, %v468
  %v470 = vpop.f32.mrf.mxu0
  %471 = vmatprep.mubr.f32.mxu0 0.0
  %472 = vmatmul.mubr.f32.gmra.mxu0 %v390
  %v473 = vpop.f32.mrf.mxu0
  %v474 = vadd.f32 0.0, %v473
  %v475 = vpop.f32.mrf.mxu0
  %476 = vdwg.mxu0
  %481 = vrot.lane.b32.xlu0 %v459, 32
  %v482 = vpop.permute.xlu0 %481
  %483 = vrot.lane.b32.xlu0 %v464, 32
  %v484 = vpop.permute.xlu0 %483
  %485 = vrot.lane.b32.xlu0 %v469, 32
  %v486 = vpop.permute.xlu0 %485
  %487 = vrot.lane.b32.xlu0 %v474, 32
  %v488 = vpop.permute.xlu0 %487
  %v493 = vadd.f32 %v376, %v482
  %v494 = vadd.f32 %v377, %v484
  %v495 = vadd.f32 %v378, %v486
  %v496 = vadd.f32 %v379, %v488
  %vm497 = vcmask 523520
  %498 = vst.msk [vmem:[#allocation2] sm:$0xff] %vm497, %v493
  %499 = vst.msk [vmem:[#allocation2 + $0x8] sm:$0xff] %vm497, %v494
  %500 = vst.msk [vmem:[#allocation2 + $0x10] sm:$0xff] %vm497, %v495
  %501 = vst.msk [vmem:[#allocation2 + $0x18] sm:$0xff] %vm497, %v496
  %v502 = vld [vmem:[%s0] sm:$0xff]
  %v503 = vld [vmem:[%s0 + $0x8] sm:$0xff]
  %v504 = vld [vmem:[%s0 + $0x10] sm:$0xff]
  %v505 = vld [vmem:[%s0 + $0x18] sm:$0xff]
  %510 = vrot.lane.b32.xlu0 %v502, 64
  %v511 = vpop.permute.xlu0 %510
  %512 = vrot.lane.b32.xlu0 %v503, 64
  %v513 = vpop.permute.xlu0 %512
  %514 = vrot.lane.b32.xlu0 %v504, 64
  %v515 = vpop.permute.xlu0 %514
  %516 = vrot.lane.b32.xlu0 %v505, 64
  %v517 = vpop.permute.xlu0 %516
  %v518 = vsel %vm51, %v511, 0
  %v520 = vsel %vm51, %v513, 0
  %v522 = vsel %vm51, %v515, 0
  %v524 = vsel %vm51, %v517, 0
  %526 = vmatprep.subr.mxu0 0.0
  %527 = vmatpush1.msra.mxu0 0.0
  %528 = vmatprep.subr.mxu0 0.0
  %529 = vmatpush1.msra.mxu0 0.0
  %530 = vmatprep.subr.mxu0 0.0
  %531 = vmatpush1.msra.mxu0 0.0
  %532 = vmatprep.subr.mxu0 0.0
  %533 = vmatpush1.msra.mxu0 0.0
  %534 = vmatprep.subr.mxu0 0.0
  %535 = vmatpush1.msra.mxu0 0.0
  %536 = vmatprep.subr.mxu0 0.0
  %537 = vmatpush1.msra.mxu0 0.0
  %538 = vmatprep.subr.mxu0 0.0
  %539 = vmatpush1.msra.mxu0 0.0
  %540 = vmatprep.subr.mxu0 0.0
  %541 = vmatpush1.msra.mxu0 0.0
  %542 = vmatprep.subr.mxu0 0.0
  %543 = vmatpush1.msra.mxu0 0.0
  %544 = vmatprep.subr.mxu0 0.0
  %545 = vmatpush1.msra.mxu0 0.0
  %546 = vmatprep.subr.mxu0 0.0
  %547 = vmatpush1.msra.mxu0 0.0
  %548 = vmatprep.subr.mxu0 0.0
  %549 = vmatpush1.msra.mxu0 0.0
  %550 = vmatprep.subr.mxu0 0.0
  %551 = vmatpush1.msra.mxu0 %v31
  %552 = vmatprep.subr.mxu0 0.0
  %553 = vmatpush1.msra.mxu0 %v30
  %554 = vmatprep.subr.mxu0 0.0
  %555 = vmatpush1.msra.mxu0 %v29
  %556 = vmatprep.subr.mxu0 0.0
  %557 = vmatpush1.msra.mxu0 %v28
  %558 = vmatprep.subr.mxu0 0.0
  %559 = vmatpush2.msra.mxu0 0.0
  %560 = vmatprep.subr.mxu0 0.0
  %561 = vmatpush2.msra.mxu0 0.0
  %562 = vmatprep.subr.mxu0 0.0
  %563 = vmatpush2.msra.mxu0 0.0
  %564 = vmatprep.subr.mxu0 0.0
  %565 = vmatpush2.msra.mxu0 0.0
  %566 = vmatprep.subr.mxu0 0.0
  %567 = vmatpush2.msra.mxu0 0.0
  %568 = vmatprep.subr.mxu0 0.0
  %569 = vmatpush2.msra.mxu0 0.0
  %570 = vmatprep.subr.mxu0 0.0
  %571 = vmatpush2.msra.mxu0 0.0
  %572 = vmatprep.subr.mxu0 0.0
  %573 = vmatpush2.msra.mxu0 0.0
  %574 = vmatprep.subr.mxu0 0.0
  %575 = vmatpush2.msra.mxu0 0.0
  %576 = vmatprep.subr.mxu0 0.0
  %577 = vmatpush2.msra.mxu0 0.0
  %578 = vmatprep.subr.mxu0 0.0
  %579 = vmatpush2.msra.mxu0 0.0
  %580 = vmatprep.subr.mxu0 0.0
  %581 = vmatpush2.msra.mxu0 0.0
  %582 = vmatprep.subr.mxu0 0.0
  %583 = vmatpush2.msra.mxu0 0.0
  %584 = vmatprep.subr.mxu0 0.0
  %585 = vmatpush2.msra.mxu0 0.0
  %586 = vmatprep.subr.mxu0 0.0
  %587 = vmatpush2.msra.mxu0 0.0
  %588 = vmatprep.subr.mxu0 0.0
  %589 = vmatpush2.msra.mxu0 0.0
  %590 = vmatprep.mubr.f32.mxu0 0.0
  %591 = vmatmul.mubr.f32.gmra.mxu0 %v518
  %v592 = vpop.f32.mrf.mxu0
  %v593 = vadd.f32 %v49, %v592
  %v594 = vpop.f32.mrf.mxu0
  %595 = vmatprep.mubr.f32.mxu0 0.0
  %596 = vmatmul.mubr.f32.gmra.mxu0 %v520
  %v597 = vpop.f32.mrf.mxu0
  %v598 = vadd.f32 %v49, %v597
  %v599 = vpop.f32.mrf.mxu0
  %600 = vmatprep.mubr.f32.mxu0 0.0
  %601 = vmatmul.mubr.f32.gmra.mxu0 %v522
  %v602 = vpop.f32.mrf.mxu0
  %v603 = vadd.f32 %v49, %v602
  %v604 = vpop.f32.mrf.mxu0
  %605 = vmatprep.mubr.f32.mxu0 0.0
  %606 = vmatmul.mubr.f32.gmra.mxu0 %v524
  %v607 = vpop.f32.mrf.mxu0
  %v608 = vadd.f32 %v49, %v607
  %v609 = vpop.f32.mrf.mxu0
  %610 = vdwg.mxu0
  %v611 = vmax.f32 %v593, 0.0
  %v612 = vmax.f32 %v598, 0.0
  %v613 = vmax.f32 %v603, 0.0
  %v614 = vmax.f32 %v608, 0.0
  %v615 = vld [vmem:[#allocation2] sm:$0xff]
  %v616 = vld [vmem:[#allocation2 + $0x8] sm:$0xff]
  %v617 = vld [vmem:[#allocation2 + $0x10] sm:$0xff]
  %v618 = vld [vmem:[#allocation2 + $0x18] sm:$0xff]
  %v620 = vsel %vm157, %v611, 0
  %v623 = vsel %vm157, %v612, 0
  %v626 = vsel %vm157, %v613, 0
  %v629 = vsel %vm157, %v614, 0
  %631 = vmatprep.subr.mxu0 0.0
  %632 = vmatpush1.msra.mxu0 0.0
  %633 = vmatprep.subr.mxu0 0.0
  %634 = vmatpush1.msra.mxu0 0.0
  %635 = vmatprep.subr.mxu0 0.0
  %636 = vmatpush1.msra.mxu0 0.0
  %637 = vmatprep.subr.mxu0 0.0
  %638 = vmatpush1.msra.mxu0 0.0
  %639 = vmatprep.subr.mxu0 0.0
  %640 = vmatpush1.msra.mxu0 0.0
  %641 = vmatprep.subr.mxu0 0.0
  %642 = vmatpush1.msra.mxu0 0.0
  %643 = vmatprep.subr.mxu0 0.0
  %644 = vmatpush1.msra.mxu0 0.0
  %645 = vmatprep.subr.mxu0 0.0
  %646 = vmatpush1.msra.mxu0 0.0
  %647 = vmatprep.subr.mxu0 0.0
  %648 = vmatpush1.msra.mxu0 %v40
  %649 = vmatprep.subr.mxu0 0.0
  %650 = vmatpush1.msra.mxu0 %v39
  %651 = vmatprep.subr.mxu0 0.0
  %652 = vmatpush1.msra.mxu0 %v38
  %653 = vmatprep.subr.mxu0 0.0
  %654 = vmatpush1.msra.mxu0 %v37
  %655 = vmatprep.subr.mxu0 0.0
  %656 = vmatpush1.msra.mxu0 %v36
  %657 = vmatprep.subr.mxu0 0.0
  %658 = vmatpush1.msra.mxu0 %v35
  %659 = vmatprep.subr.mxu0 0.0
  %660 = vmatpush1.msra.mxu0 %v34
  %661 = vmatprep.subr.mxu0 0.0
  %662 = vmatpush1.msra.mxu0 %v33
  %663 = vmatprep.subr.mxu0 0.0
  %664 = vmatpush2.msra.mxu0 0.0
  %665 = vmatprep.subr.mxu0 0.0
  %666 = vmatpush2.msra.mxu0 0.0
  %667 = vmatprep.subr.mxu0 0.0
  %668 = vmatpush2.msra.mxu0 0.0
  %669 = vmatprep.subr.mxu0 0.0
  %670 = vmatpush2.msra.mxu0 0.0
  %671 = vmatprep.subr.mxu0 0.0
  %672 = vmatpush2.msra.mxu0 0.0
  %673 = vmatprep.subr.mxu0 0.0
  %674 = vmatpush2.msra.mxu0 0.0
  %675 = vmatprep.subr.mxu0 0.0
  %676 = vmatpush2.msra.mxu0 0.0
  %677 = vmatprep.subr.mxu0 0.0
  %678 = vmatpush2.msra.mxu0 0.0
  %679 = vmatprep.subr.mxu0 0.0
  %680 = vmatpush2.msra.mxu0 0.0
  %681 = vmatprep.subr.mxu0 0.0
  %682 = vmatpush2.msra.mxu0 0.0
  %683 = vmatprep.subr.mxu0 0.0
  %684 = vmatpush2.msra.mxu0 0.0
  %685 = vmatprep.subr.mxu0 0.0
  %686 = vmatpush2.msra.mxu0 0.0
  %687 = vmatprep.subr.mxu0 0.0
  %688 = vmatpush2.msra.mxu0 0.0
  %689 = vmatprep.subr.mxu0 0.0
  %690 = vmatpush2.msra.mxu0 0.0
  %691 = vmatprep.subr.mxu0 0.0
  %692 = vmatpush2.msra.mxu0 0.0
  %693 = vmatprep.subr.mxu0 0.0
  %694 = vmatpush2.msra.mxu0 0.0
  %695 = vmatprep.mubr.f32.mxu0 0.0
  %696 = vmatmul.mubr.f32.gmra.mxu0 %v620
  %v697 = vpop.f32.mrf.mxu0
  %v698 = vadd.f32 0.0, %v697
  %v699 = vpop.f32.mrf.mxu0
  %700 = vmatprep.mubr.f32.mxu0 0.0
  %701 = vmatmul.mubr.f32.gmra.mxu0 %v623
  %v702 = vpop.f32.mrf.mxu0
  %v703 = vadd.f32 0.0, %v702
  %v704 = vpop.f32.mrf.mxu0
  %705 = vmatprep.mubr.f32.mxu0 0.0
  %706 = vmatmul.mubr.f32.gmra.mxu0 %v626
  %v707 = vpop.f32.mrf.mxu0
  %v708 = vadd.f32 0.0, %v707
  %v709 = vpop.f32.mrf.mxu0
  %710 = vmatprep.mubr.f32.mxu0 0.0
  %711 = vmatmul.mubr.f32.gmra.mxu0 %v629
  %v712 = vpop.f32.mrf.mxu0
  %v713 = vadd.f32 0.0, %v712
  %v714 = vpop.f32.mrf.mxu0
  %715 = vdwg.mxu0
  %720 = vrot.lane.b32.xlu0 %v698, 64
  %v721 = vpop.permute.xlu0 %720
  %722 = vrot.lane.b32.xlu0 %v703, 64
  %v723 = vpop.permute.xlu0 %722
  %724 = vrot.lane.b32.xlu0 %v708, 64
  %v725 = vpop.permute.xlu0 %724
  %726 = vrot.lane.b32.xlu0 %v713, 64
  %v727 = vpop.permute.xlu0 %726
  %v732 = vadd.f32 %v615, %v721
  %v733 = vadd.f32 %v616, %v723
  %v734 = vadd.f32 %v617, %v725
  %v735 = vadd.f32 %v618, %v727
  %vm736 = vcmask 785920
  %737 = vst.msk [vmem:[#allocation2] sm:$0xff] %vm736, %v732
  %738 = vst.msk [vmem:[#allocation2 + $0x8] sm:$0xff] %vm736, %v733
  %739 = vst.msk [vmem:[#allocation2 + $0x10] sm:$0xff] %vm736, %v734
  %740 = vst.msk [vmem:[#allocation2 + $0x18] sm:$0xff] %vm736, %v735
  %v741 = vld [vmem:[%s0] sm:$0xff]
  %v742 = vld [vmem:[%s0 + $0x8] sm:$0xff]
  %v743 = vld [vmem:[%s0 + $0x10] sm:$0xff]
  %v744 = vld [vmem:[%s0 + $0x18] sm:$0xff]
  %749 = vrot.lane.b32.xlu0 %v741, 32
  %v750 = vpop.permute.xlu0 %749
  %751 = vrot.lane.b32.xlu0 %v742, 32
  %v752 = vpop.permute.xlu0 %751
  %753 = vrot.lane.b32.xlu0 %v743, 32
  %v754 = vpop.permute.xlu0 %753
  %755 = vrot.lane.b32.xlu0 %v744, 32
  %v756 = vpop.permute.xlu0 %755
  %v757 = vsel %vm51, %v750, 0
  %v759 = vsel %vm51, %v752, 0
  %v761 = vsel %vm51, %v754, 0
  %v763 = vsel %vm51, %v756, 0
  %765 = vmatprep.subr.mxu0 0.0
  %766 = vmatpush1.msra.mxu0 0.0
  %767 = vmatprep.subr.mxu0 0.0
  %768 = vmatpush1.msra.mxu0 0.0
  %769 = vmatprep.subr.mxu0 0.0
  %770 = vmatpush1.msra.mxu0 0.0
  %771 = vmatprep.subr.mxu0 0.0
  %772 = vmatpush1.msra.mxu0 0.0
  %773 = vmatprep.subr.mxu0 0.0
  %774 = vmatpush1.msra.mxu0 0.0
  %775 = vmatprep.subr.mxu0 0.0
  %776 = vmatpush1.msra.mxu0 0.0
  %777 = vmatprep.subr.mxu0 0.0
  %778 = vmatpush1.msra.mxu0 0.0
  %779 = vmatprep.subr.mxu0 0.0
  %780 = vmatpush1.msra.mxu0 0.0
  %781 = vmatprep.subr.mxu0 0.0
  %782 = vmatpush1.msra.mxu0 0.0
  %783 = vmatprep.subr.mxu0 0.0
  %784 = vmatpush1.msra.mxu0 0.0
  %785 = vmatprep.subr.mxu0 0.0
  %786 = vmatpush1.msra.mxu0 0.0
  %787 = vmatprep.subr.mxu0 0.0
  %788 = vmatpush1.msra.mxu0 0.0
  %789 = vmatprep.subr.mxu0 0.0
  %790 = vmatpush1.msra.mxu0 %v31
  %791 = vmatprep.subr.mxu0 0.0
  %792 = vmatpush1.msra.mxu0 %v30
  %793 = vmatprep.subr.mxu0 0.0
  %794 = vmatpush1.msra.mxu0 %v29
  %795 = vmatprep.subr.mxu0 0.0
  %796 = vmatpush1.msra.mxu0 %v28
  %797 = vmatprep.subr.mxu0 0.0
  %798 = vmatpush2.msra.mxu0 0.0
  %799 = vmatprep.subr.mxu0 0.0
  %800 = vmatpush2.msra.mxu0 0.0
  %801 = vmatprep.subr.mxu0 0.0
  %802 = vmatpush2.msra.mxu0 0.0
  %803 = vmatprep.subr.mxu0 0.0
  %804 = vmatpush2.msra.mxu0 0.0
  %805 = vmatprep.subr.mxu0 0.0
  %806 = vmatpush2.msra.mxu0 0.0
  %807 = vmatprep.subr.mxu0 0.0
  %808 = vmatpush2.msra.mxu0 0.0
  %809 = vmatprep.subr.mxu0 0.0
  %810 = vmatpush2.msra.mxu0 0.0
  %811 = vmatprep.subr.mxu0 0.0
  %812 = vmatpush2.msra.mxu0 0.0
  %813 = vmatprep.subr.mxu0 0.0
  %814 = vmatpush2.msra.mxu0 0.0
  %815 = vmatprep.subr.mxu0 0.0
  %816 = vmatpush2.msra.mxu0 0.0
  %817 = vmatprep.subr.mxu0 0.0
  %818 = vmatpush2.msra.mxu0 0.0
  %819 = vmatprep.subr.mxu0 0.0
  %820 = vmatpush2.msra.mxu0 0.0
  %821 = vmatprep.subr.mxu0 0.0
  %822 = vmatpush2.msra.mxu0 0.0
  %823 = vmatprep.subr.mxu0 0.0
  %824 = vmatpush2.msra.mxu0 0.0
  %825 = vmatprep.subr.mxu0 0.0
  %826 = vmatpush2.msra.mxu0 0.0
  %827 = vmatprep.subr.mxu0 0.0
  %828 = vmatpush2.msra.mxu0 0.0
  %829 = vmatprep.mubr.f32.mxu0 0.0
  %830 = vmatmul.mubr.f32.gmra.mxu0 %v757
  %v831 = vpop.f32.mrf.mxu0
  %v832 = vadd.f32 %v49, %v831
  %v833 = vpop.f32.mrf.mxu0
  %834 = vmatprep.mubr.f32.mxu0 0.0
  %835 = vmatmul.mubr.f32.gmra.mxu0 %v759
  %v836 = vpop.f32.mrf.mxu0
  %v837 = vadd.f32 %v49, %v836
  %v838 = vpop.f32.mrf.mxu0
  %839 = vmatprep.mubr.f32.mxu0 0.0
  %840 = vmatmul.mubr.f32.gmra.mxu0 %v761
  %v841 = vpop.f32.mrf.mxu0
  %v842 = vadd.f32 %v49, %v841
  %v843 = vpop.f32.mrf.mxu0
  %844 = vmatprep.mubr.f32.mxu0 0.0
  %845 = vmatmul.mubr.f32.gmra.mxu0 %v763
  %v846 = vpop.f32.mrf.mxu0
  %v847 = vadd.f32 %v49, %v846
  %v848 = vpop.f32.mrf.mxu0
  %849 = vdwg.mxu0
  %v850 = vmax.f32 %v832, 0.0
  %v851 = vmax.f32 %v837, 0.0
  %v852 = vmax.f32 %v842, 0.0
  %v853 = vmax.f32 %v847, 0.0
  %v854 = vld [vmem:[#allocation2] sm:$0xff]
  %v855 = vld [vmem:[#allocation2 + $0x8] sm:$0xff]
  %v856 = vld [vmem:[#allocation2 + $0x10] sm:$0xff]
  %v857 = vld [vmem:[#allocation2 + $0x18] sm:$0xff]
  %v859 = vsel %vm157, %v850, 0
  %v862 = vsel %vm157, %v851, 0
  %v865 = vsel %vm157, %v852, 0
  %v868 = vsel %vm157, %v853, 0
  %870 = vmatprep.subr.mxu0 0.0
  %871 = vmatpush1.msra.mxu0 0.0
  %872 = vmatprep.subr.mxu0 0.0
  %873 = vmatpush1.msra.mxu0 0.0
  %874 = vmatprep.subr.mxu0 0.0
  %875 = vmatpush1.msra.mxu0 0.0
  %876 = vmatprep.subr.mxu0 0.0
  %877 = vmatpush1.msra.mxu0 0.0
  %878 = vmatprep.subr.mxu0 0.0
  %879 = vmatpush1.msra.mxu0 0.0
  %880 = vmatprep.subr.mxu0 0.0
  %881 = vmatpush1.msra.mxu0 0.0
  %882 = vmatprep.subr.mxu0 0.0
  %883 = vmatpush1.msra.mxu0 0.0
  %884 = vmatprep.subr.mxu0 0.0
  %885 = vmatpush1.msra.mxu0 0.0
  %886 = vmatprep.subr.mxu0 0.0
  %887 = vmatpush1.msra.mxu0 %v40
  %888 = vmatprep.subr.mxu0 0.0
  %889 = vmatpush1.msra.mxu0 %v39
  %890 = vmatprep.subr.mxu0 0.0
  %891 = vmatpush1.msra.mxu0 %v38
  %892 = vmatprep.subr.mxu0 0.0
  %893 = vmatpush1.msra.mxu0 %v37
  %894 = vmatprep.subr.mxu0 0.0
  %895 = vmatpush1.msra.mxu0 %v36
  %896 = vmatprep.subr.mxu0 0.0
  %897 = vmatpush1.msra.mxu0 %v35
  %898 = vmatprep.subr.mxu0 0.0
  %899 = vmatpush1.msra.mxu0 %v34
  %900 = vmatprep.subr.mxu0 0.0
  %901 = vmatpush1.msra.mxu0 %v33
  %902 = vmatprep.subr.mxu0 0.0
  %903 = vmatpush2.msra.mxu0 0.0
  %904 = vmatprep.subr.mxu0 0.0
  %905 = vmatpush2.msra.mxu0 0.0
  %906 = vmatprep.subr.mxu0 0.0
  %907 = vmatpush2.msra.mxu0 0.0
  %908 = vmatprep.subr.mxu0 0.0
  %909 = vmatpush2.msra.mxu0 0.0
  %910 = vmatprep.subr.mxu0 0.0
  %911 = vmatpush2.msra.mxu0 0.0
  %912 = vmatprep.subr.mxu0 0.0
  %913 = vmatpush2.msra.mxu0 0.0
  %914 = vmatprep.subr.mxu0 0.0
  %915 = vmatpush2.msra.mxu0 0.0
  %916 = vmatprep.subr.mxu0 0.0
  %917 = vmatpush2.msra.mxu0 0.0
  %918 = vmatprep.subr.mxu0 0.0
  %919 = vmatpush2.msra.mxu0 0.0
  %920 = vmatprep.subr.mxu0 0.0
  %921 = vmatpush2.msra.mxu0 0.0
  %922 = vmatprep.subr.mxu0 0.0
  %923 = vmatpush2.msra.mxu0 0.0
  %924 = vmatprep.subr.mxu0 0.0
  %925 = vmatpush2.msra.mxu0 0.0
  %926 = vmatprep.subr.mxu0 0.0
  %927 = vmatpush2.msra.mxu0 0.0
  %928 = vmatprep.subr.mxu0 0.0
  %929 = vmatpush2.msra.mxu0 0.0
  %930 = vmatprep.subr.mxu0 0.0
  %931 = vmatpush2.msra.mxu0 0.0
  %932 = vmatprep.subr.mxu0 0.0
  %933 = vmatpush2.msra.mxu0 0.0
  %934 = vmatprep.mubr.f32.mxu0 0.0
  %935 = vmatmul.mubr.f32.gmra.mxu0 %v859
  %v936 = vpop.f32.mrf.mxu0
  %v937 = vadd.f32 0.0, %v936
  %v938 = vpop.f32.mrf.mxu0
  %939 = vmatprep.mubr.f32.mxu0 0.0
  %940 = vmatmul.mubr.f32.gmra.mxu0 %v862
  %v941 = vpop.f32.mrf.mxu0
  %v942 = vadd.f32 0.0, %v941
  %v943 = vpop.f32.mrf.mxu0
  %944 = vmatprep.mubr.f32.mxu0 0.0
  %945 = vmatmul.mubr.f32.gmra.mxu0 %v865
  %v946 = vpop.f32.mrf.mxu0
  %v947 = vadd.f32 0.0, %v946
  %v948 = vpop.f32.mrf.mxu0
  %949 = vmatprep.mubr.f32.mxu0 0.0
  %950 = vmatmul.mubr.f32.gmra.mxu0 %v868
  %v951 = vpop.f32.mrf.mxu0
  %v952 = vadd.f32 0.0, %v951
  %v953 = vpop.f32.mrf.mxu0
  %954 = vdwg.mxu0
  %959 = vrot.lane.b32.xlu0 %v937, 96
  %v960 = vpop.permute.xlu0 %959
  %961 = vrot.lane.b32.xlu0 %v942, 96
  %v962 = vpop.permute.xlu0 %961
  %963 = vrot.lane.b32.xlu0 %v947, 96
  %v964 = vpop.permute.xlu0 %963
  %965 = vrot.lane.b32.xlu0 %v952, 96
  %v966 = vpop.permute.xlu0 %965
  %v971 = vadd.f32 %v854, %v960
  %v972 = vadd.f32 %v855, %v962
  %v973 = vadd.f32 %v856, %v964
  %v974 = vadd.f32 %v857, %v966
  %vm975 = vcmask 1048320
  %976 = vst.msk [vmem:[#allocation2] sm:$0xff] %vm975, %v971
  %977 = vst.msk [vmem:[#allocation2 + $0x8] sm:$0xff] %vm975, %v972
  %978 = vst.msk [vmem:[#allocation2 + $0x10] sm:$0xff] %vm975, %v973
  %979 = vst.msk [vmem:[#allocation2 + $0x18] sm:$0xff] %vm975, %v974
  // Predicated region
  $region26: #{mlp_pallas.1} parent=0 // pred_check
    %p980 = pneg %p20
  $region27: #{mlp_pallas.1} parent=0 // pred_check_branch
    %982 = sbr.rel (%p980) target = $region29
  $region28: #{mlp_pallas.1} parent=0 // pred_region
    %v983 = vld [vmem:[#allocation2] sm:$0xff]
    %v984 = vld [vmem:[#allocation2 + $0x8] sm:$0xff]
    %v985 = vld [vmem:[#allocation2 + $0x10] sm:$0xff]
    %v986 = vld [vmem:[#allocation2 + $0x18] sm:$0xff]
    %v987 = vld [vmem:[%s4] sm:$0x1]
    %v989 = vlaneseq
    %v990 = vshrl.u32 %v989, 7
    %v991 = vsub.s32 0, %v990
    %v992 = vrot.slane %v987, %v991
    %v994 = vadd.f32 %v983, %v992
    %v995 = vadd.f32 %v984, %v992
    %v996 = vadd.f32 %v985, %v992
    %v997 = vadd.f32 %v986, %v992
    %998 = vst [vmem:[%s5] sm:$0xff] %v994
    %999 = vst [vmem:[%s5 + $0x8] sm:$0xff] %v995
    %1000 = vst [vmem:[%s5 + $0x10] sm:$0xff] %v996
    %1001 = vst [vmem:[%s5 + $0x18] sm:$0xff] %v997
  $region29: #{mlp_pallas.1} parent=0 // pred_fallthru
    _
  // Predicated region
  $region30: #{mlp_pallas.1} parent=0 // pred_check
    _
  $region31: #{mlp_pallas.1} parent=0 // pred_check_branch
    %1003 = sbr.rel (0) target = $region33
  $region32: #{mlp_pallas.1} parent=0 // pred_region
    _
  $region33: #{mlp_pallas.1} parent=0 // pred_fallthru
    _
  // Predicated region
  $region34: #{mlp_pallas.1} parent=0 // pred_check
    _
  $region35: #{mlp_pallas.1} parent=0 // pred_check_branch
    %1005 = sbr.rel (0) target = $region37
  $region36: #{mlp_pallas.1} parent=0 // pred_region
    _
  $region37: #{mlp_pallas.1} parent=0 // pred_fallthru
    _

</llo_original>
